<compile_context>
chip_gen: v5e
topology: v5e:2x2
jax: 0.10.0
libtpu: 0.0.40
codegen_flags: <defaults>
</compile_context>

<pallas_src>
import functools

import numpy as np

import jax
import jax.numpy as jnp
from jax.experimental import pallas as pl
from jax.experimental.pallas import tpu as pltpu

EPS = 1e-5


# ----------------------------- wrapper-side weight packing -------------------

def _conv3x3_toeplitz(w, w_in, w_out, stride):
    """Pack a (3,3,Cin,Cout) conv weight into 3 banded block-Toeplitz matmul
    operands (one per kh), shape (3, W_in*Cin, W_out*Cout), bf16.

    Row index = wi*Cin + ci (lane position of the input slab),
    col index = wo*Cout + co (lane position of the output slab); entry (wi, wo)
    holds w[kh, kw] where wi == stride*wo + kw - 1.  Input columns outside
    [0, W_in) (the conv's padding=1 in W) simply get no band entry, so no lane
    padding of the activations is needed.
    """
    cin, cout = int(w.shape[2]), int(w.shape[3])
    sel = np.zeros((3, w_in, w_out), np.float32)
    for kw in range(3):
        for wo in range(w_out):
            wi = stride * wo + kw - 1
            if 0 <= wi < w_in:
                sel[kw, wi, wo] = 1.0
    t = jnp.einsum("kxw,hkio->hxiwo", jnp.asarray(sel), w.astype(jnp.float32))
    return t.reshape(3, w_in * cin, w_out * cout).astype(jnp.bfloat16)


def _conv1x1_toeplitz(w3, w_in, w_out, stride):
    """Pack a (1,1,Cin,Cout) conv weight into a (strided) block-diagonal matmul
    operand of shape (W_in*Cin, W_out*Cout), bf16 (lane-dense 1x1 conv)."""
    cin, cout = int(w3.shape[2]), int(w3.shape[3])
    sel = np.zeros((w_in, w_out), np.float32)
    for wo in range(w_out):
        sel[stride * wo, wo] = 1.0
    t = jnp.einsum("xw,io->xiwo", jnp.asarray(sel), w3[0, 0].astype(jnp.float32))
    return t.reshape(w_in * cin, w_out * cout).astype(jnp.bfloat16)


# ----------------------------- in-kernel helpers ------------------------------

def _per_channel_allreduce(v, cout):
    """v: (1, Wo*Cout) f32 row in the lane-dense layout (lane = wo*Cout + co).
    Returns a (1, Wo*Cout) row where EVERY lane holds the sum over its
    channel's Wo lane-group -- i.e. the per-channel total, already broadcast
    back to all wo positions.  Pure XLU lane rotations; no lane<->sublane
    relayout, no reshape."""
    lanes = v.shape[-1]
    wout = lanes // cout
    if (wout & (wout - 1)) == 0:          # power of two -> log tree of rolls
        shift = cout
        while shift < lanes:
            v = v + pltpu.roll(v, shift=shift, axis=1)
            shift *= 2
        return v
    acc, r = v, v                          # general case: wout-1 rotations
    for _ in range(wout - 1):
        r = pltpu.roll(r, shift=cout, axis=1)
        acc = acc + r
    return acc


# ----------------------------------- fused Residual-block kernel -------------

def _residual_kernel(use_1x1conv, stride, hout, wout, cout, *refs):
    if use_1x1conv:
        (x_ref, wt1_ref, g1_ref, be1_ref, wt2_ref, g2_ref, be2_ref,
         wt3_ref, b3_ref, out_ref, xpad_ref, ypad_ref) = refs
    else:
        (x_ref, wt1_ref, g1_ref, be1_ref, wt2_ref, g2_ref, be2_ref,
         out_ref, xpad_ref, ypad_ref) = refs

    n, h, wc_in = x_ref.shape
    lanes = wout * cout                    # minor dim of all activation slabs
    m_rows = n * hout
    inv_m = 1.0 / float(m_rows * wout)     # 1 / (N*Ho*Wo)

    def conv3x3(pad_ref, wt_ref, s):
        """3x3 conv on the lane-dense slab: 3 per-kh MXU matmuls (bf16
        operands, f32 accumulation).  The kw taps + W padding live in the
        Toeplitz RHS; only the kh row shift is taken from the padded ref."""
        acc = None
        for kh in range(3):
            if s == 1:
                t = pad_ref[:, kh:kh + hout, :]
            else:  # TODO(synk): stride>1 path not exercised by the self-test
                t = pad_ref[:, pl.ds(kh, hout, stride=s), :]
            lhs = t.reshape(m_rows, t.shape[-1]).astype(jnp.bfloat16)
            p = jnp.dot(lhs, wt_ref[kh], preferred_element_type=jnp.float32)
            acc = p if acc is None else acc + p
        return acc                                        # (m_rows, lanes) f32

    def bn_affine(y, g_l, be_l):
        """Training-mode BatchNorm folded into per-lane (scale, shift);
        centered two-pass variance; stats stay in the lane-dense layout."""
        mean_l = _per_channel_allreduce(
            jnp.sum(y, axis=0, keepdims=True), cout) * inv_m
        d = y - mean_l
        var_l = _per_channel_allreduce(
            jnp.sum(d * d, axis=0, keepdims=True), cout) * inv_m
        scale_l = g_l * jax.lax.rsqrt(var_l + EPS)
        shift_l = be_l - mean_l * scale_l
        return scale_l, shift_l

    # ---- stage x with its H halo (full-lane-width zero-row stores only) -----
    zx = jnp.zeros((n, 1, wc_in), jnp.float32)
    xpad_ref[:, 0:1, :] = zx
    xpad_ref[:, h + 1:h + 2, :] = zx
    xpad_ref[:, 1:h + 1, :] = x_ref[...]

    # ---- conv1 -> bn1 -> relu (conv bias cancels under training-mode BN) ----
    y1 = conv3x3(xpad_ref, wt1_ref, stride)
    s1, t1 = bn_affine(y1, g1_ref[...], be1_ref[...])
    z1 = jnp.maximum(y1 * s1 + t1, 0.0)                   # (m_rows, lanes) f32

    # ---- conv2 -> bn2 --------------------------------------------------------
    zy = jnp.zeros((n, 1, lanes), jnp.float32)
    ypad_ref[:, 0:1, :] = zy
    ypad_ref[:, hout + 1:hout + 2, :] = zy
    ypad_ref[:, 1:hout + 1, :] = z1.reshape(n, hout, lanes)
    y2 = conv3x3(ypad_ref, wt2_ref, 1)
    s2, t2 = bn_affine(y2, g2_ref[...], be2_ref[...])

    # ---- shortcut ------------------------------------------------------------
    if use_1x1conv:
        if stride == 1:
            xs = x_ref[...]
        else:  # TODO(synk): stride>1 path not exercised by the self-test
            xs = x_ref[:, pl.ds(0, hout, stride=stride), :]
        sc = jnp.dot(xs.reshape(m_rows, wc_in).astype(jnp.bfloat16),
                     wt3_ref[...], preferred_element_type=jnp.float32)
        sc = sc + b3_ref[...]
    else:
        # identity shortcut: same lane layout (stride == 1, Cin == Cout), exact f32
        sc = x_ref[...].reshape(m_rows, lanes)

    # ---- residual add + relu; lane-dense store, no relayout ------------------
    out_ref[...] = jnp.maximum(y2 * s2 + t2 + sc, 0.0).astype(out_ref.dtype)


# ------------------------------------------------ wrapper / glue --------------

def residual_forward(x_nchw, params, *, use_1x1conv=False, stride=1):
    n, cin, h, w = x_nchw.shape
    cout = params["w1"].shape[-1]
    if not use_1x1conv:
        assert stride == 1 and cin == cout, (
            "identity shortcut requires stride == 1 and in_channels == out_channels")
    hout = (h - 1) // stride + 1
    wout = (w - 1) // stride + 1
    lanes = wout * cout
    m_rows = n * hout

    # NCHW -> lane-dense (N, H, W*Cin) slab: W is packed into lanes so the
    # 128-lane vregs stay full even with Cin/Cout = 4..8.  In a real NHWC
    # pipeline this transpose disappears; it is kept only to accept the
    # PyTorch-layout input.  No wrapper-side spatial padding.
    x = jnp.transpose(x_nchw, (0, 2, 3, 1)).reshape(n, h, w * cin).astype(jnp.float32)

    # Conv weights pre-packed as banded block-Toeplitz matmul operands (bf16).
    wt1 = _conv3x3_toeplitz(params["w1"], w, wout, stride)     # (3, W*Cin,  Wo*Cout)
    wt2 = _conv3x3_toeplitz(params["w2"], wout, wout, 1)       # (3, Wo*Cout, Wo*Cout)

    # BN gamma/beta pre-tiled to the lane layout (hoisted broadcasts), f32.
    g1 = jnp.tile(params["g1"].astype(jnp.float32), (1, wout))
    be1 = jnp.tile(params["be1"].astype(jnp.float32), (1, wout))
    g2 = jnp.tile(params["g2"].astype(jnp.float32), (1, wout))
    be2 = jnp.tile(params["be2"].astype(jnp.float32), (1, wout))

    inputs = [x, wt1, g1, be1, wt2, g2, be2]
    if use_1x1conv:
        inputs += [_conv1x1_toeplitz(params["w3"], w, wout, stride),
                   jnp.tile(params["b3"].astype(jnp.float32), (1, wout))]

    # H-halo staging buffers (kept in the f32 input precision; MXU operands are
    # downcast at the matmul -- see TODO about bf16 staging at real sizes).
    scratch = [pltpu.VMEM((n, h + 2, w * cin), jnp.float32),
               pltpu.VMEM((n, hout + 2, lanes), jnp.float32)]

    flops = 2 * m_rows * lanes * (3 * w * cin + 3 * lanes)
    if use_1x1conv:
        flops += 2 * m_rows * (w * cin) * lanes
    bytes_in = sum(int(a.size) * a.dtype.itemsize for a in inputs)
    bytes_out = 4 * m_rows * lanes
    cost = pl.CostEstimate(flops=flops, transcendentals=2 * lanes,
                           bytes_accessed=bytes_in + bytes_out)

    # VMEM limit: actual need (no grid -> no pipeline double-buffering), capped
    # below the physical per-core capacity of the current generation.
    phys_vmem = 64 << 20                                   # v7x per-core floor
    try:
        phys_vmem = int(pltpu.get_tpu_info().vmem_capacity_bytes)
    except Exception:
        pass
    scratch_bytes = 4 * (n * (h + 2) * w * cin + n * (hout + 2) * lanes)
    vmem_need = bytes_in + bytes_out + scratch_bytes + (2 << 20)
    vmem_limit = int(min(phys_vmem * 3 // 4, max(16 << 20, vmem_need)))

    vmem = pl.BlockSpec(memory_space=pltpu.MemorySpace.VMEM)
    kernel = functools.partial(_residual_kernel, use_1x1conv, stride,
                               hout, wout, cout)

    out = pl.pallas_call(
        kernel,
        out_shape=jax.ShapeDtypeStruct((m_rows, lanes), jnp.float32),
        in_specs=[vmem] * len(inputs),
        out_specs=vmem,
        scratch_shapes=scratch,
        compiler_params=pltpu.CompilerParams(vmem_limit_bytes=vmem_limit),
        cost_estimate=cost,
    )(*inputs)

    # Lane-dense (N*Ho, Wo*Cout) -> NCHW (wrapper-side layout plumbing).
    return jnp.transpose(out.reshape(n, hout, wout, cout), (0, 3, 1, 2))


def init_params(key, cin, cout, use_1x1conv):
    """Deterministic synthetic init (conv: uniform fan-in style, BN: gamma=1, beta=0)."""
    k1, k2, k3, k4, k5, k6 = jax.random.split(key, 6)
    s1 = 1.0 / (cin * 9) ** 0.5
    s2 = 1.0 / (cout * 9) ** 0.5
    p = {
        "w1": jax.random.uniform(k1, (3, 3, cin, cout), jnp.float32, -s1, s1),
        "b1": jax.random.uniform(k2, (1, cout), jnp.float32, -s1, s1),
        "g1": jnp.ones((1, cout), jnp.float32),
        "be1": jnp.zeros((1, cout), jnp.float32),
        "w2": jax.random.uniform(k3, (3, 3, cout, cout), jnp.float32, -s2, s2),
        "b2": jax.random.uniform(k4, (1, cout), jnp.float32, -s2, s2),
        "g2": jnp.ones((1, cout), jnp.float32),
        "be2": jnp.zeros((1, cout), jnp.float32),
    }
    if use_1x1conv:
        s3 = 1.0 / cin ** 0.5
        p["w3"] = jax.random.uniform(k5, (1, 1, cin, cout), jnp.float32, -s3, s3)
        p["b3"] = jax.random.uniform(k6, (1, cout), jnp.float32, -s3, s3)
    return p


# ------------------------------------------------ pure-JAX reference ----------

def residual_reference(x_nchw, params, *, use_1x1conv=False, stride=1):
    x = x_nchw.astype(jnp.float32)

    def conv(x, w, b, s, pad):
        y = jax.lax.conv_general_dilated(
            x, w, window_strides=(s, s), padding=[(pad, pad), (pad, pad)],
            dimension_numbers=("NCHW", "HWIO", "NCHW"))
        return y + b.reshape(1, -1, 1, 1)

    def bn(y, g, be):
        mean = jnp.mean(y, axis=(0, 2, 3), keepdims=True)
        var = jnp.var(y, axis=(0, 2, 3), keepdims=True)
        return (y - mean) * jax.lax.rsqrt(var + EPS) * g.reshape(1, -1, 1, 1) \
            + be.reshape(1, -1, 1, 1)

    y = jax.nn.relu(bn(conv(x, params["w1"], params["b1"][0], stride, 1),
                       params["g1"], params["be1"]))
    y = bn(conv(y, params["w2"], params["b2"][0], 1, 1),
           params["g2"], params["be2"])
    sc = conv(x, params["w3"], params["b3"][0], stride, 0) if use_1x1conv else x
    return jax.nn.relu(y + sc)


if __name__ == "__main__":
    root = jax.random.PRNGKey(0)

    cases = [
        # (N, Cin, Cout, H=W, use_1x1conv, stride)
        (2, 4, 8, 16, True, 1),    # channel-changing block with 1x1 shortcut conv
        (2, 8, 8, 16, False, 1),   # identity-shortcut block
    ]

    for idx, (n, cin, cout, hw, use_1x1, stride) in enumerate(cases):
        kx, kp = jax.random.split(jax.random.fold_in(root, idx))
        x = jax.random.normal(kx, (n, cin, hw, hw), jnp.float32)   # NCHW like PyTorch
        params = init_params(kp, cin, cout, use_1x1)

        out = jax.block_until_ready(
            residual_forward(x, params, use_1x1conv=use_1x1, stride=stride))
        ref = jax.block_until_ready(
            residual_reference(x, params, use_1x1conv=use_1x1, stride=stride))

        assert out.shape == ref.shape, (out.shape, ref.shape)
        err = float(jnp.max(jnp.abs(out - ref)))
        # Tolerance reflects bf16 MXU operands (f32 accumulation) vs f32 reference.
        assert jnp.allclose(out, ref, atol=5e-2, rtol=5e-2), (idx, err)

    print("KERNEL_OK")
</pallas_src>

<mosaic_0001>
module attributes {stable_mosaic.version = 11 : i64} {
  func.func @_residual_kernel(%arg0: memref<2x16x64xf32, #tpu.memory_space<vmem>>, %arg1: memref<3x64x128xbf16, #tpu.memory_space<vmem>>, %arg2: memref<1x128xf32, #tpu.memory_space<vmem>>, %arg3: memref<1x128xf32, #tpu.memory_space<vmem>>, %arg4: memref<3x128x128xbf16, #tpu.memory_space<vmem>>, %arg5: memref<1x128xf32, #tpu.memory_space<vmem>>, %arg6: memref<1x128xf32, #tpu.memory_space<vmem>>, %arg7: memref<64x128xbf16, #tpu.memory_space<vmem>>, %arg8: memref<1x128xf32, #tpu.memory_space<vmem>>, %arg9: memref<32x128xf32, #tpu.memory_space<vmem>>, %arg10: memref<2x18x64xf32, #tpu.memory_space<vmem>>, %arg11: memref<2x18x128xf32, #tpu.memory_space<vmem>>) attributes {dimension_semantics = [], scalar_prefetch = 0 : i64, scratch_operands = 2 : i64, tpu.core_type = #tpu.core_type<tc>} {
    %cst = arith.constant 0.000000e+00 : f32
    %0 = vector.broadcast %cst : f32 to vector<2x1x64xf32>
    %c0 = arith.constant 0 : index
    %c0_0 = arith.constant 0 : index
    %c0_1 = arith.constant 0 : index
    %1 = vector.load %arg10[%c0, %c0_0, %c0_1] : memref<2x18x64xf32, #tpu.memory_space<vmem>>, vector<2x1x64xf32>
    tpu.vector_store %arg10[%c0, %c0_0, %c0_1], %0 {strides = array<i32>} : memref<2x18x64xf32, #tpu.memory_space<vmem>>, vector<2x1x64xf32>,
    %c0_2 = arith.constant 0 : index
    %c17 = arith.constant 17 : index
    %c0_3 = arith.constant 0 : index
    %2 = vector.load %arg10[%c0_2, %c17, %c0_3] : memref<2x18x64xf32, #tpu.memory_space<vmem>>, vector<2x1x64xf32>
    tpu.vector_store %arg10[%c0_2, %c17, %c0_3], %0 {strides = array<i32>} : memref<2x18x64xf32, #tpu.memory_space<vmem>>, vector<2x1x64xf32>,
    %c0_4 = arith.constant 0 : index
    %c0_5 = arith.constant 0 : index
    %c0_6 = arith.constant 0 : index
    %3 = vector.load %arg0[%c0_4, %c0_5, %c0_6] : memref<2x16x64xf32, #tpu.memory_space<vmem>>, vector<2x16x64xf32>
    %c0_7 = arith.constant 0 : index
    %c1 = arith.constant 1 : index
    %c0_8 = arith.constant 0 : index
    %4 = vector.load %arg10[%c0_7, %c1, %c0_8] : memref<2x18x64xf32, #tpu.memory_space<vmem>>, vector<2x16x64xf32>
    tpu.vector_store %arg10[%c0_7, %c1, %c0_8], %3 {strides = array<i32>} : memref<2x18x64xf32, #tpu.memory_space<vmem>>, vector<2x16x64xf32>,
    %c0_9 = arith.constant 0 : index
    %c0_10 = arith.constant 0 : index
    %c0_11 = arith.constant 0 : index
    %5 = vector.load %arg10[%c0_9, %c0_10, %c0_11] : memref<2x18x64xf32, #tpu.memory_space<vmem>>, vector<2x16x64xf32>
    %6 = vector.shape_cast %5 : vector<2x16x64xf32> to vector<32x64xf32>
    %7 = arith.truncf %6 : vector<32x64xf32> to vector<32x64xbf16>
    %c0_12 = arith.constant 0 : index
    %c0_13 = arith.constant 0 : index
    %c0_14 = arith.constant 0 : index
    %8 = vector.load %arg1[%c0_12, %c0_13, %c0_14] : memref<3x64x128xbf16, #tpu.memory_space<vmem>>, vector<1x64x128xbf16>
    %9 = vector.shape_cast %8 : vector<1x64x128xbf16> to vector<64x128xbf16>
    %cst_15 = arith.constant dense<0.000000e+00> : vector<32x128xf32>
    %10 = tpu.matmul %7, %9, %cst_15 {dimension_numbers = #tpu.dot_dimension_numbers<[1], [0], [0], [1], [0, 0, 1, 1], [], []>} : vector<32x64xbf16>, vector<64x128xbf16>, vector<32x128xf32> -> vector<32x128xf32>
    %c0_16 = arith.constant 0 : index
    %c1_17 = arith.constant 1 : index
    %c0_18 = arith.constant 0 : index
    %11 = vector.load %arg10[%c0_16, %c1_17, %c0_18] : memref<2x18x64xf32, #tpu.memory_space<vmem>>, vector<2x16x64xf32>
    %12 = vector.shape_cast %11 : vector<2x16x64xf32> to vector<32x64xf32>
    %13 = arith.truncf %12 : vector<32x64xf32> to vector<32x64xbf16>
    %c1_19 = arith.constant 1 : index
    %c0_20 = arith.constant 0 : index
    %c0_21 = arith.constant 0 : index
    %14 = vector.load %arg1[%c1_19, %c0_20, %c0_21] : memref<3x64x128xbf16, #tpu.memory_space<vmem>>, vector<1x64x128xbf16>
    %15 = vector.shape_cast %14 : vector<1x64x128xbf16> to vector<64x128xbf16>
    %cst_22 = arith.constant dense<0.000000e+00> : vector<32x128xf32>
    %16 = tpu.matmul %13, %15, %cst_22 {dimension_numbers = #tpu.dot_dimension_numbers<[1], [0], [0], [1], [0, 0, 1, 1], [], []>} : vector<32x64xbf16>, vector<64x128xbf16>, vector<32x128xf32> -> vector<32x128xf32>
    %17 = arith.addf %10, %16 : vector<32x128xf32>
    %c0_23 = arith.constant 0 : index
    %c2 = arith.constant 2 : index
    %c0_24 = arith.constant 0 : index
    %18 = vector.load %arg10[%c0_23, %c2, %c0_24] : memref<2x18x64xf32, #tpu.memory_space<vmem>>, vector<2x16x64xf32>
    %19 = vector.shape_cast %18 : vector<2x16x64xf32> to vector<32x64xf32>
    %20 = arith.truncf %19 : vector<32x64xf32> to vector<32x64xbf16>
    %c2_25 = arith.constant 2 : index
    %c0_26 = arith.constant 0 : index
    %c0_27 = arith.constant 0 : index
    %21 = vector.load %arg1[%c2_25, %c0_26, %c0_27] : memref<3x64x128xbf16, #tpu.memory_space<vmem>>, vector<1x64x128xbf16>
    %22 = vector.shape_cast %21 : vector<1x64x128xbf16> to vector<64x128xbf16>
    %cst_28 = arith.constant dense<0.000000e+00> : vector<32x128xf32>
    %23 = tpu.matmul %20, %22, %cst_28 {dimension_numbers = #tpu.dot_dimension_numbers<[1], [0], [0], [1], [0, 0, 1, 1], [], []>} : vector<32x64xbf16>, vector<64x128xbf16>, vector<32x128xf32> -> vector<32x128xf32>
    %24 = arith.addf %17, %23 : vector<32x128xf32>
    %c0_29 = arith.constant 0 : index
    %c0_30 = arith.constant 0 : index
    %25 = vector.load %arg2[%c0_29, %c0_30] : memref<1x128xf32, #tpu.memory_space<vmem>>, vector<1x128xf32>
    %c0_31 = arith.constant 0 : index
    %c0_32 = arith.constant 0 : index
    %26 = vector.load %arg3[%c0_31, %c0_32] : memref<1x128xf32, #tpu.memory_space<vmem>>, vector<1x128xf32>
    %cst_33 = arith.constant dense<0.000000e+00> : vector<128xf32>
    %27 = vector.multi_reduction <add>, %24, %cst_33 [0] : vector<32x128xf32> to vector<128xf32>
    %28 = vector.shape_cast %27 : vector<128xf32> to vector<1x128xf32>
    %c8_i32 = arith.constant 8 : i32
    %29 = tpu.dynamic_rotate %28 by %c8_i32 dim 1 : vector<1x128xf32>, i32 -> vector<1x128xf32>
    %30 = arith.addf %28, %29 : vector<1x128xf32>
    %c16_i32 = arith.constant 16 : i32
    %31 = tpu.dynamic_rotate %30 by %c16_i32 dim 1 : vector<1x128xf32>, i32 -> vector<1x128xf32>
    %32 = arith.addf %30, %31 : vector<1x128xf32>
    %c32_i32 = arith.constant 32 : i32
    %33 = tpu.dynamic_rotate %32 by %c32_i32 dim 1 : vector<1x128xf32>, i32 -> vector<1x128xf32>
    %34 = arith.addf %32, %33 : vector<1x128xf32>
    %c64_i32 = arith.constant 64 : i32
    %35 = tpu.dynamic_rotate %34 by %c64_i32 dim 1 : vector<1x128xf32>, i32 -> vector<1x128xf32>
    %36 = arith.addf %34, %35 : vector<1x128xf32>
    %cst_34 = arith.constant 0.001953125 : f32
    %37 = vector.broadcast %cst_34 : f32 to vector<1x128xf32>
    %38 = arith.mulf %36, %37 : vector<1x128xf32>
    %39 = vector.broadcast %38 : vector<1x128xf32> to vector<32x128xf32>
    %40 = arith.subf %24, %39 : vector<32x128xf32>
    %41 = arith.mulf %40, %40 : vector<32x128xf32>
    %cst_35 = arith.constant dense<0.000000e+00> : vector<128xf32>
    %42 = vector.multi_reduction <add>, %41, %cst_35 [0] : vector<32x128xf32> to vector<128xf32>
    %43 = vector.shape_cast %42 : vector<128xf32> to vector<1x128xf32>
    %c8_i32_36 = arith.constant 8 : i32
    %44 = tpu.dynamic_rotate %43 by %c8_i32_36 dim 1 : vector<1x128xf32>, i32 -> vector<1x128xf32>
    %45 = arith.addf %43, %44 : vector<1x128xf32>
    %c16_i32_37 = arith.constant 16 : i32
    %46 = tpu.dynamic_rotate %45 by %c16_i32_37 dim 1 : vector<1x128xf32>, i32 -> vector<1x128xf32>
    %47 = arith.addf %45, %46 : vector<1x128xf32>
    %c32_i32_38 = arith.constant 32 : i32
    %48 = tpu.dynamic_rotate %47 by %c32_i32_38 dim 1 : vector<1x128xf32>, i32 -> vector<1x128xf32>
    %49 = arith.addf %47, %48 : vector<1x128xf32>
    %c64_i32_39 = arith.constant 64 : i32
    %50 = tpu.dynamic_rotate %49 by %c64_i32_39 dim 1 : vector<1x128xf32>, i32 -> vector<1x128xf32>
    %51 = arith.addf %49, %50 : vector<1x128xf32>
    %cst_40 = arith.constant 0.001953125 : f32
    %52 = vector.broadcast %cst_40 : f32 to vector<1x128xf32>
    %53 = arith.mulf %51, %52 : vector<1x128xf32>
    %cst_41 = arith.constant 9.99999974E-6 : f32
    %54 = vector.broadcast %cst_41 : f32 to vector<1x128xf32>
    %55 = arith.addf %53, %54 : vector<1x128xf32>
    %56 = math.rsqrt %55 : vector<1x128xf32>
    %57 = arith.mulf %25, %56 : vector<1x128xf32>
    %58 = arith.mulf %38, %57 : vector<1x128xf32>
    %59 = arith.subf %26, %58 : vector<1x128xf32>
    %60 = vector.broadcast %57 : vector<1x128xf32> to vector<32x128xf32>
    %61 = arith.mulf %24, %60 : vector<32x128xf32>
    %62 = vector.broadcast %59 : vector<1x128xf32> to vector<32x128xf32>
    %63 = arith.addf %61, %62 : vector<32x128xf32>
    %cst_42 = arith.constant 0.000000e+00 : f32
    %64 = vector.broadcast %cst_42 : f32 to vector<32x128xf32>
    %65 = arith.maximumf %63, %64 : vector<32x128xf32>
    %cst_43 = arith.constant 0.000000e+00 : f32
    %66 = vector.broadcast %cst_43 : f32 to vector<2x1x128xf32>
    %c0_44 = arith.constant 0 : index
    %c0_45 = arith.constant 0 : index
    %c0_46 = arith.constant 0 : index
    %67 = vector.load %arg11[%c0_44, %c0_45, %c0_46] : memref<2x18x128xf32, #tpu.memory_space<vmem>>, vector<2x1x128xf32>
    tpu.vector_store %arg11[%c0_44, %c0_45, %c0_46], %66 {strides = array<i32>} : memref<2x18x128xf32, #tpu.memory_space<vmem>>, vector<2x1x128xf32>,
    %c0_47 = arith.constant 0 : index
    %c17_48 = arith.constant 17 : index
    %c0_49 = arith.constant 0 : index
    %68 = vector.load %arg11[%c0_47, %c17_48, %c0_49] : memref<2x18x128xf32, #tpu.memory_space<vmem>>, vector<2x1x128xf32>
    tpu.vector_store %arg11[%c0_47, %c17_48, %c0_49], %66 {strides = array<i32>} : memref<2x18x128xf32, #tpu.memory_space<vmem>>, vector<2x1x128xf32>,
    %69 = vector.shape_cast %65 : vector<32x128xf32> to vector<2x16x128xf32>
    %c0_50 = arith.constant 0 : index
    %c1_51 = arith.constant 1 : index
    %c0_52 = arith.constant 0 : index
    %70 = vector.load %arg11[%c0_50, %c1_51, %c0_52] : memref<2x18x128xf32, #tpu.memory_space<vmem>>, vector<2x16x128xf32>
    tpu.vector_store %arg11[%c0_50, %c1_51, %c0_52], %69 {strides = array<i32>} : memref<2x18x128xf32, #tpu.memory_space<vmem>>, vector<2x16x128xf32>,
    %c0_53 = arith.constant 0 : index
    %c0_54 = arith.constant 0 : index
    %c0_55 = arith.constant 0 : index
    %71 = vector.load %arg11[%c0_53, %c0_54, %c0_55] : memref<2x18x128xf32, #tpu.memory_space<vmem>>, vector<2x16x128xf32>
    %72 = vector.shape_cast %71 : vector<2x16x128xf32> to vector<32x128xf32>
    %73 = arith.truncf %72 : vector<32x128xf32> to vector<32x128xbf16>
    %c0_56 = arith.constant 0 : index
    %c0_57 = arith.constant 0 : index
    %c0_58 = arith.constant 0 : index
    %74 = vector.load %arg4[%c0_56, %c0_57, %c0_58] : memref<3x128x128xbf16, #tpu.memory_space<vmem>>, vector<1x128x128xbf16>
    %75 = vector.shape_cast %74 : vector<1x128x128xbf16> to vector<128x128xbf16>
    %cst_59 = arith.constant dense<0.000000e+00> : vector<32x128xf32>
    %76 = tpu.matmul %73, %75, %cst_59 {dimension_numbers = #tpu.dot_dimension_numbers<[1], [0], [0], [1], [0, 0, 1, 1], [], []>} : vector<32x128xbf16>, vector<128x128xbf16>, vector<32x128xf32> -> vector<32x128xf32>
    %c0_60 = arith.constant 0 : index
    %c1_61 = arith.constant 1 : index
    %c0_62 = arith.constant 0 : index
    %77 = vector.load %arg11[%c0_60, %c1_61, %c0_62] : memref<2x18x128xf32, #tpu.memory_space<vmem>>, vector<2x16x128xf32>
    %78 = vector.shape_cast %77 : vector<2x16x128xf32> to vector<32x128xf32>
    %79 = arith.truncf %78 : vector<32x128xf32> to vector<32x128xbf16>
    %c1_63 = arith.constant 1 : index
    %c0_64 = arith.constant 0 : index
    %c0_65 = arith.constant 0 : index
    %80 = vector.load %arg4[%c1_63, %c0_64, %c0_65] : memref<3x128x128xbf16, #tpu.memory_space<vmem>>, vector<1x128x128xbf16>
    %81 = vector.shape_cast %80 : vector<1x128x128xbf16> to vector<128x128xbf16>
    %cst_66 = arith.constant dense<0.000000e+00> : vector<32x128xf32>
    %82 = tpu.matmul %79, %81, %cst_66 {dimension_numbers = #tpu.dot_dimension_numbers<[1], [0], [0], [1], [0, 0, 1, 1], [], []>} : vector<32x128xbf16>, vector<128x128xbf16>, vector<32x128xf32> -> vector<32x128xf32>
    %83 = arith.addf %76, %82 : vector<32x128xf32>
    %c0_67 = arith.constant 0 : index
    %c2_68 = arith.constant 2 : index
    %c0_69 = arith.constant 0 : index
    %84 = vector.load %arg11[%c0_67, %c2_68, %c0_69] : memref<2x18x128xf32, #tpu.memory_space<vmem>>, vector<2x16x128xf32>
    %85 = vector.shape_cast %84 : vector<2x16x128xf32> to vector<32x128xf32>
    %86 = arith.truncf %85 : vector<32x128xf32> to vector<32x128xbf16>
    %c2_70 = arith.constant 2 : index
    %c0_71 = arith.constant 0 : index
    %c0_72 = arith.constant 0 : index
    %87 = vector.load %arg4[%c2_70, %c0_71, %c0_72] : memref<3x128x128xbf16, #tpu.memory_space<vmem>>, vector<1x128x128xbf16>
    %88 = vector.shape_cast %87 : vector<1x128x128xbf16> to vector<128x128xbf16>
    %cst_73 = arith.constant dense<0.000000e+00> : vector<32x128xf32>
    %89 = tpu.matmul %86, %88, %cst_73 {dimension_numbers = #tpu.dot_dimension_numbers<[1], [0], [0], [1], [0, 0, 1, 1], [], []>} : vector<32x128xbf16>, vector<128x128xbf16>, vector<32x128xf32> -> vector<32x128xf32>
    %90 = arith.addf %83, %89 : vector<32x128xf32>
    %c0_74 = arith.constant 0 : index
    %c0_75 = arith.constant 0 : index
    %91 = vector.load %arg5[%c0_74, %c0_75] : memref<1x128xf32, #tpu.memory_space<vmem>>, vector<1x128xf32>
    %c0_76 = arith.constant 0 : index
    %c0_77 = arith.constant 0 : index
    %92 = vector.load %arg6[%c0_76, %c0_77] : memref<1x128xf32, #tpu.memory_space<vmem>>, vector<1x128xf32>
    %cst_78 = arith.constant dense<0.000000e+00> : vector<128xf32>
    %93 = vector.multi_reduction <add>, %90, %cst_78 [0] : vector<32x128xf32> to vector<128xf32>
    %94 = vector.shape_cast %93 : vector<128xf32> to vector<1x128xf32>
    %c8_i32_79 = arith.constant 8 : i32
    %95 = tpu.dynamic_rotate %94 by %c8_i32_79 dim 1 : vector<1x128xf32>, i32 -> vector<1x128xf32>
    %96 = arith.addf %94, %95 : vector<1x128xf32>
    %c16_i32_80 = arith.constant 16 : i32
    %97 = tpu.dynamic_rotate %96 by %c16_i32_80 dim 1 : vector<1x128xf32>, i32 -> vector<1x128xf32>
    %98 = arith.addf %96, %97 : vector<1x128xf32>
    %c32_i32_81 = arith.constant 32 : i32
    %99 = tpu.dynamic_rotate %98 by %c32_i32_81 dim 1 : vector<1x128xf32>, i32 -> vector<1x128xf32>
    %100 = arith.addf %98, %99 : vector<1x128xf32>
    %c64_i32_82 = arith.constant 64 : i32
    %101 = tpu.dynamic_rotate %100 by %c64_i32_82 dim 1 : vector<1x128xf32>, i32 -> vector<1x128xf32>
    %102 = arith.addf %100, %101 : vector<1x128xf32>
    %cst_83 = arith.constant 0.001953125 : f32
    %103 = vector.broadcast %cst_83 : f32 to vector<1x128xf32>
    %104 = arith.mulf %102, %103 : vector<1x128xf32>
    %105 = vector.broadcast %104 : vector<1x128xf32> to vector<32x128xf32>
    %106 = arith.subf %90, %105 : vector<32x128xf32>
    %107 = arith.mulf %106, %106 : vector<32x128xf32>
    %cst_84 = arith.constant dense<0.000000e+00> : vector<128xf32>
    %108 = vector.multi_reduction <add>, %107, %cst_84 [0] : vector<32x128xf32> to vector<128xf32>
    %109 = vector.shape_cast %108 : vector<128xf32> to vector<1x128xf32>
    %c8_i32_85 = arith.constant 8 : i32
    %110 = tpu.dynamic_rotate %109 by %c8_i32_85 dim 1 : vector<1x128xf32>, i32 -> vector<1x128xf32>
    %111 = arith.addf %109, %110 : vector<1x128xf32>
    %c16_i32_86 = arith.constant 16 : i32
    %112 = tpu.dynamic_rotate %111 by %c16_i32_86 dim 1 : vector<1x128xf32>, i32 -> vector<1x128xf32>
    %113 = arith.addf %111, %112 : vector<1x128xf32>
    %c32_i32_87 = arith.constant 32 : i32
    %114 = tpu.dynamic_rotate %113 by %c32_i32_87 dim 1 : vector<1x128xf32>, i32 -> vector<1x128xf32>
    %115 = arith.addf %113, %114 : vector<1x128xf32>
    %c64_i32_88 = arith.constant 64 : i32
    %116 = tpu.dynamic_rotate %115 by %c64_i32_88 dim 1 : vector<1x128xf32>, i32 -> vector<1x128xf32>
    %117 = arith.addf %115, %116 : vector<1x128xf32>
    %cst_89 = arith.constant 0.001953125 : f32
    %118 = vector.broadcast %cst_89 : f32 to vector<1x128xf32>
    %119 = arith.mulf %117, %118 : vector<1x128xf32>
    %cst_90 = arith.constant 9.99999974E-6 : f32
    %120 = vector.broadcast %cst_90 : f32 to vector<1x128xf32>
    %121 = arith.addf %119, %120 : vector<1x128xf32>
    %122 = math.rsqrt %121 : vector<1x128xf32>
    %123 = arith.mulf %91, %122 : vector<1x128xf32>
    %124 = arith.mulf %104, %123 : vector<1x128xf32>
    %125 = arith.subf %92, %124 : vector<1x128xf32>
    %c0_91 = arith.constant 0 : index
    %c0_92 = arith.constant 0 : index
    %c0_93 = arith.constant 0 : index
    %126 = vector.load %arg0[%c0_91, %c0_92, %c0_93] : memref<2x16x64xf32, #tpu.memory_space<vmem>>, vector<2x16x64xf32>
    %127 = vector.shape_cast %126 : vector<2x16x64xf32> to vector<32x64xf32>
    %128 = arith.truncf %127 : vector<32x64xf32> to vector<32x64xbf16>
    %c0_94 = arith.constant 0 : index
    %c0_95 = arith.constant 0 : index
    %129 = vector.load %arg7[%c0_94, %c0_95] : memref<64x128xbf16, #tpu.memory_space<vmem>>, vector<64x128xbf16>
    %cst_96 = arith.constant dense<0.000000e+00> : vector<32x128xf32>
    %130 = tpu.matmul %128, %129, %cst_96 {dimension_numbers = #tpu.dot_dimension_numbers<[1], [0], [0], [1], [0, 0, 1, 1], [], []>} : vector<32x64xbf16>, vector<64x128xbf16>, vector<32x128xf32> -> vector<32x128xf32>
    %c0_97 = arith.constant 0 : index
    %c0_98 = arith.constant 0 : index
    %131 = vector.load %arg8[%c0_97, %c0_98] : memref<1x128xf32, #tpu.memory_space<vmem>>, vector<1x128xf32>
    %132 = vector.broadcast %131 : vector<1x128xf32> to vector<32x128xf32>
    %133 = arith.addf %130, %132 : vector<32x128xf32>
    %134 = vector.broadcast %123 : vector<1x128xf32> to vector<32x128xf32>
    %135 = arith.mulf %90, %134 : vector<32x128xf32>
    %136 = vector.broadcast %125 : vector<1x128xf32> to vector<32x128xf32>
    %137 = arith.addf %135, %136 : vector<32x128xf32>
    %138 = arith.addf %137, %133 : vector<32x128xf32>
    %cst_99 = arith.constant 0.000000e+00 : f32
    %139 = vector.broadcast %cst_99 : f32 to vector<32x128xf32>
    %140 = arith.maximumf %138, %139 : vector<32x128xf32>
    %c0_100 = arith.constant 0 : index
    %c0_101 = arith.constant 0 : index
    %141 = vector.load %arg9[%c0_100, %c0_101] : memref<32x128xf32, #tpu.memory_space<vmem>>, vector<32x128xf32>
    tpu.vector_store %arg9[%c0_100, %c0_101], %140 {strides = array<i32>} : memref<32x128xf32, #tpu.memory_space<vmem>>, vector<32x128xf32>,
    return
  }
}

</mosaic_0001>

<llo_original>
// kernel: tpu_custom_call.1
$region0: #{tpu_custom_call.1}
  #allocation0 [shape = 'u32[]', space=smem, size = 0x4, offset = 0x4, fixed_abs, tag = 'smem constant byte address 0x4 - core index']
  #allocation1 [shape = 'u32[72,128]{1,0:T(1,128)}', space=vmem, size = 0x9000, scoped, tag = 'internal scratch']
  #allocation2 [shape = 'f32[2,18,64]{2,1,0:T(8,128)}', space=vmem, size = 0x6000, scoped, tag = 'scratch operand']
  #allocation3 [shape = 'f32[2,18,128]{2,1,0:T(8,128)}', space=vmem, size = 0x6000, scoped, tag = 'scratch operand']
  %s0 = inlined_call_operand.hbm [shape: f32[2,16,64], index: 0, kind: input, shape index: {}]
  %s1 = inlined_call_operand.hbm [shape: bf16[3,64,128], index: 1, kind: input, shape index: {}]
  %s2 = inlined_call_operand.vmem [shape: f32[1,128], index: 2, kind: input, shape index: {}]
  %s3 = inlined_call_operand.vmem [shape: f32[1,128], index: 3, kind: input, shape index: {}]
  %s4 = inlined_call_operand.hbm [shape: bf16[3,128,128], index: 4, kind: input, shape index: {}]
  %s5 = inlined_call_operand.vmem [shape: f32[1,128], index: 5, kind: input, shape index: {}]
  %s6 = inlined_call_operand.vmem [shape: f32[1,128], index: 6, kind: input, shape index: {}]
  %s7 = inlined_call_operand.hbm [shape: bf16[64,128], index: 7, kind: input, shape index: {}]
  %s8 = inlined_call_operand.vmem [shape: f32[1,128], index: 8, kind: input, shape index: {}]
  %s9 = inlined_call_operand.hbm [shape: f32[32,128], index: 9, kind: output, shape index: {}]
  %s10 = sld [smem:[#allocation0]]
  $region62: #{tpu_custom_call.1} parent=0
    _
  %s12 = ssub.s32 1, %s10
  %s13 = scalar_select 0, %s12, %s10
  $region1: #{tpu_custom_call.1} parent=0
    #allocation4 [shape = 'u8[16384]{0}', space=vmem, size = 0x4000, scoped, tag = 'input window, operand 0, single buffered']
    #allocation5 [shape = 's32[1]{0}', space=sflag, size = 0x4, scoped, tag = 'scoped memory for tpu_custom_call.1']
    #allocation6 [shape = 's32[1]{0}', space=sflag, size = 0x4, scoped, tag = 'scoped memory for tpu_custom_call.1']
    #allocation7 [shape = 'u8[49152]{0}', space=vmem, size = 0xc000, scoped, tag = 'input window, operand 1, single buffered']
    #allocation8 [shape = 's32[1]{0}', space=sflag, size = 0x4, scoped, tag = 'scoped memory for tpu_custom_call.1']
    #allocation9 [shape = 'u8[98304]{0}', space=vmem, size = 0x18000, scoped, tag = 'input window, operand 4, single buffered']
    #allocation10 [shape = 'u8[16384]{0}', space=vmem, size = 0x4000, scoped, tag = 'input window, operand 7, single buffered']
    #allocation11 [shape = 's32[1]{0}', space=sflag, size = 0x4, scoped, tag = 'scoped memory for tpu_custom_call.1']
    #allocation12 [shape = 'u8[16384]{0}', space=vmem, size = 0x4000, scoped, tag = 'output window, operand 0, single buffered']
    %14 = vsyncpa [#allocation5], 0
    %15 = vsyncpa [#allocation8], 0
    %16 = vsyncpa [#allocation11], 0
    %17 = vsyncpa [#allocation6], 0
    // Predicated region
    $region2: #{tpu_custom_call.1} parent=1 // pred_check
      _
    $region3: #{tpu_custom_call.1} parent=1 // pred_check_branch
      %19 = sbr.rel (0) target = $region5
    $region4: #{tpu_custom_call.1} parent=1 // pred_region
      %21 = vsyncadd [#allocation5], 0
      %s22 = sshll.u32 %s0, 4
      %s23 = int_to_ptr.hbm [resolvable:$true] %s22
      %s24 = sshll.u32 [#allocation4], 4
      %s25 = int_to_ptr.vmem [resolvable:$true] %s24
      %30 = dma.hbm_to_vmem [thread:$0]  %s23, 512, %s25, [#allocation5], 128, 128, 8
    $region5: #{tpu_custom_call.1} parent=1 // pred_fallthru
      _
    // Predicated region
    $region6: #{tpu_custom_call.1} parent=1 // pred_check
      _
    $region7: #{tpu_custom_call.1} parent=1 // pred_check_branch
      %32 = sbr.rel (0) target = $region9
    $region8: #{tpu_custom_call.1} parent=1 // pred_region
      %34 = vsyncadd [#allocation8], 0
      %s35 = sshll.u32 %s1, 4
      %s36 = int_to_ptr.hbm [resolvable:$true] %s35
      %s37 = sshll.u32 [#allocation7], 4
      %s38 = int_to_ptr.vmem [resolvable:$true] %s37
      %43 = dma.hbm_to_vmem [thread:$0]  %s36, 1536, %s38, [#allocation8], 64, 64, 4
    $region9: #{tpu_custom_call.1} parent=1 // pred_fallthru
      _
    // Predicated region
    $region10: #{tpu_custom_call.1} parent=1 // pred_check
      _
    $region11: #{tpu_custom_call.1} parent=1 // pred_check_branch
      %45 = sbr.rel (0) target = $region13
    $region12: #{tpu_custom_call.1} parent=1 // pred_region
      _
    $region13: #{tpu_custom_call.1} parent=1 // pred_fallthru
      _
    // Predicated region
    $region14: #{tpu_custom_call.1} parent=1 // pred_check
      _
    $region15: #{tpu_custom_call.1} parent=1 // pred_check_branch
      %47 = sbr.rel (0) target = $region17
    $region16: #{tpu_custom_call.1} parent=1 // pred_region
      _
    $region17: #{tpu_custom_call.1} parent=1 // pred_fallthru
      _
    // Predicated region
    $region18: #{tpu_custom_call.1} parent=1 // pred_check
      _
    $region19: #{tpu_custom_call.1} parent=1 // pred_check_branch
      %49 = sbr.rel (0) target = $region21
    $region20: #{tpu_custom_call.1} parent=1 // pred_region
      %51 = vsyncadd [#allocation8], 0
      %s52 = sshll.u32 %s4, 4
      %s53 = int_to_ptr.hbm [resolvable:$true] %s52
      %s54 = sshll.u32 [#allocation9], 4
      %s55 = int_to_ptr.vmem [resolvable:$true] %s54
      %60 = dma.hbm_to_vmem [thread:$0]  %s53, 3072, %s55, [#allocation8], 64, 64, 4
    $region21: #{tpu_custom_call.1} parent=1 // pred_fallthru
      _
    // Predicated region
    $region22: #{tpu_custom_call.1} parent=1 // pred_check
      _
    $region23: #{tpu_custom_call.1} parent=1 // pred_check_branch
      %62 = sbr.rel (0) target = $region25
    $region24: #{tpu_custom_call.1} parent=1 // pred_region
      _
    $region25: #{tpu_custom_call.1} parent=1 // pred_fallthru
      _
    // Predicated region
    $region26: #{tpu_custom_call.1} parent=1 // pred_check
      _
    $region27: #{tpu_custom_call.1} parent=1 // pred_check_branch
      %64 = sbr.rel (0) target = $region29
    $region28: #{tpu_custom_call.1} parent=1 // pred_region
      _
    $region29: #{tpu_custom_call.1} parent=1 // pred_fallthru
      _
    // Predicated region
    $region30: #{tpu_custom_call.1} parent=1 // pred_check
      _
    $region31: #{tpu_custom_call.1} parent=1 // pred_check_branch
      %66 = sbr.rel (0) target = $region33
    $region32: #{tpu_custom_call.1} parent=1 // pred_region
      %68 = vsyncadd [#allocation11], 0
      %s69 = sshll.u32 %s7, 4
      %s70 = int_to_ptr.hbm [resolvable:$true] %s69
      %s71 = sshll.u32 [#allocation10], 4
      %s72 = int_to_ptr.vmem [resolvable:$true] %s71
      %77 = dma.hbm_to_vmem [thread:$0]  %s70, 512, %s72, [#allocation11], 64, 64, 4
    $region33: #{tpu_custom_call.1} parent=1 // pred_fallthru
      _
    // Predicated region
    $region34: #{tpu_custom_call.1} parent=1 // pred_check
      _
    $region35: #{tpu_custom_call.1} parent=1 // pred_check_branch
      %79 = sbr.rel (0) target = $region37
    $region36: #{tpu_custom_call.1} parent=1 // pred_region
      _
    $region37: #{tpu_custom_call.1} parent=1 // pred_fallthru
      _
    // Predicated region
    $region38: #{tpu_custom_call.1} parent=1 // pred_check
      _
    $region39: #{tpu_custom_call.1} parent=1 // pred_check_branch
      %81 = sbr.rel (0) target = $region41
    $region40: #{tpu_custom_call.1} parent=1 // pred_region
      %83 = dma.done [#allocation5], 512
    $region41: #{tpu_custom_call.1} parent=1 // pred_fallthru
      _
    // Predicated region
    $region42: #{tpu_custom_call.1} parent=1 // pred_check
      _
    $region43: #{tpu_custom_call.1} parent=1 // pred_check_branch
      %85 = sbr.rel (0) target = $region45
    $region44: #{tpu_custom_call.1} parent=1 // pred_region
      %87 = dma.done [#allocation8], 1536
    $region45: #{tpu_custom_call.1} parent=1 // pred_fallthru
      _
    // Predicated region
    $region46: #{tpu_custom_call.1} parent=1 // pred_check
      _
    $region47: #{tpu_custom_call.1} parent=1 // pred_check_branch
      %89 = sbr.rel (0) target = $region49
    $region48: #{tpu_custom_call.1} parent=1 // pred_region
      %91 = dma.done [#allocation8], 3072
    $region49: #{tpu_custom_call.1} parent=1 // pred_fallthru
      _
    // Predicated region
    $region50: #{tpu_custom_call.1} parent=1 // pred_check
      _
    $region51: #{tpu_custom_call.1} parent=1 // pred_check_branch
      %93 = sbr.rel (0) target = $region53
    $region52: #{tpu_custom_call.1} parent=1 // pred_region
      %95 = dma.done [#allocation11], 512
    $region53: #{tpu_custom_call.1} parent=1 // pred_fallthru
      _
    %vm97 = vcmask 516096
    %98 = vst.msk [vmem:[#allocation2] sm:$0x1] %vm97, 0.0
    %99 = vst.msk [vmem:[#allocation2 + $0x18] sm:$0x1] %vm97, 0.0
    %100 = vst.msk [vmem:[#allocation2 + $0x11] sm:$0x1] %vm97, 0.0
    %101 = vst.msk [vmem:[#allocation2 + $0x29] sm:$0x1] %vm97, 0.0
    %v102 = vld [vmem:[#allocation4] sm:$0xff]
    %v103 = vld [vmem:[#allocation4 + $0x8] sm:$0xff]
    %v104 = vld [vmem:[#allocation4 + $0x10] sm:$0xff]
    %v105 = vld [vmem:[#allocation4 + $0x18] sm:$0xff]
    %vm106 = vcmask 523264
    %107 = vst.msk [vmem:[#allocation2 + $0x1] sm:$0xff] %vm106, %v102
    %108 = vst.msk [vmem:[#allocation2 + $0x9] sm:$0xff] %vm106, %v103
    %109 = vst.msk [vmem:[#allocation2 + $0x19] sm:$0xff] %vm106, %v104
    %110 = vst.msk [vmem:[#allocation2 + $0x21] sm:$0xff] %vm106, %v105
    %v111 = vld [vmem:[#allocation2] sm:$0xff]
    %v112 = vld [vmem:[#allocation2 + $0x8] sm:$0xff]
    %v113 = vld [vmem:[#allocation2 + $0x18] sm:$0xff]
    %v114 = vld [vmem:[#allocation2 + $0x20] sm:$0xff]
    %v115 = vpack.c.bf16 %v112, %v111
    %v116 = vpack.c.bf16 %v114, %v113
    %v117 = vld [vmem:[#allocation7] sm:$0xf]
    %v118 = vld [vmem:[#allocation7 + $0x4] sm:$0xf]
    %v119 = vld [vmem:[#allocation7 + $0x8] sm:$0xf]
    %v120 = vld [vmem:[#allocation7 + $0xc] sm:$0xf]
    %v121 = vld [vmem:[#allocation7 + $0x10] sm:$0xf]
    %v122 = vld [vmem:[#allocation7 + $0x14] sm:$0xf]
    %v123 = vld [vmem:[#allocation7 + $0x18] sm:$0xf]
    %v124 = vld [vmem:[#allocation7 + $0x1c] sm:$0xf]
    %v125 = vld [vmem:[#allocation2 + $0x1] sm:$0xff]
    %v126 = vld [vmem:[#allocation2 + $0x9] sm:$0xff]
    %v127 = vld [vmem:[#allocation2 + $0x19] sm:$0xff]
    %v128 = vld [vmem:[#allocation2 + $0x21] sm:$0xff]
    %v129 = vpack.c.bf16 %v126, %v125
    %v130 = vpack.c.bf16 %v128, %v127
    %s131 = scalar_lea.vmem [#allocation7], 32
    %v132 = vld [vmem:[%s131] sm:$0xf]
    %v133 = vld [vmem:[%s131 + $0x4] sm:$0xf]
    %v134 = vld [vmem:[%s131 + $0x8] sm:$0xf]
    %v135 = vld [vmem:[%s131 + $0xc] sm:$0xf]
    %v136 = vld [vmem:[%s131 + $0x10] sm:$0xf]
    %v137 = vld [vmem:[%s131 + $0x14] sm:$0xf]
    %v138 = vld [vmem:[%s131 + $0x18] sm:$0xf]
    %v139 = vld [vmem:[%s131 + $0x1c] sm:$0xf]
    %v148 = vunpack.c.l.b16 %v132
    %v149 = vunpack.c.l.b16 %v133
    %v150 = vunpack.c.l.b16 %v134
    %v151 = vunpack.c.l.b16 %v135
    %v152 = vunpack.c.l.b16 %v136
    %v153 = vunpack.c.l.b16 %v137
    %v154 = vunpack.c.l.b16 %v138
    %v155 = vunpack.c.l.b16 %v139
    %v156 = vpack.c.b16 %v149, %v148
    %v157 = vpack.c.b16 %v151, %v150
    %v158 = vpack.c.b16 %v153, %v152
    %v159 = vpack.c.b16 %v155, %v154
    %v165 = vsel %vm106, %v129, 0
    %v168 = vsel %vm106, %v130, 0
    %170 = vmatpush.bf16.msra.mxu0 0
    %171 = vmatpush.bf16.msra.mxu0 0
    %172 = vmatpush.bf16.msra.mxu0 0
    %173 = vmatpush.bf16.msra.mxu0 0
    %174 = vmatpush.bf16.msra.mxu0 %v159
    %175 = vmatpush.bf16.msra.mxu0 %v158
    %176 = vmatpush.bf16.msra.mxu0 %v157
    %177 = vmatpush.bf16.msra.mxu0 %v156
    %178 = vmatmul.bf16.gmra.mxu0 %v165
    %v179 = vpop.f32.mrf.mxu0
    %v180 = vadd.f32 0.0, %v179
    %v181 = vpop.f32.mrf.mxu0
    %v182 = vadd.f32 0.0, %v181
    %183 = vmatmul.bf16.gmra.mxu0 %v168
    %v184 = vpop.f32.mrf.mxu0
    %v185 = vadd.f32 0.0, %v184
    %v186 = vpop.f32.mrf.mxu0
    %v187 = vadd.f32 0.0, %v186
    %188 = vdwg.mxu0
    %v197 = vunpack.c.l.b16 %v117
    %v198 = vunpack.c.l.b16 %v118
    %v199 = vunpack.c.l.b16 %v119
    %v200 = vunpack.c.l.b16 %v120
    %v201 = vunpack.c.l.b16 %v121
    %v202 = vunpack.c.l.b16 %v122
    %v203 = vunpack.c.l.b16 %v123
    %v204 = vunpack.c.l.b16 %v124
    %v205 = vpack.c.b16 %v198, %v197
    %v206 = vpack.c.b16 %v200, %v199
    %v207 = vpack.c.b16 %v202, %v201
    %v208 = vpack.c.b16 %v204, %v203
    %v214 = vsel %vm106, %v115, 0
    %v217 = vsel %vm106, %v116, 0
    %219 = vmatpush.bf16.msra.mxu0 0
    %220 = vmatpush.bf16.msra.mxu0 0
    %221 = vmatpush.bf16.msra.mxu0 0
    %222 = vmatpush.bf16.msra.mxu0 0
    %223 = vmatpush.bf16.msra.mxu0 %v208
    %224 = vmatpush.bf16.msra.mxu0 %v207
    %225 = vmatpush.bf16.msra.mxu0 %v206
    %226 = vmatpush.bf16.msra.mxu0 %v205
    %227 = vmatmul.bf16.gmra.mxu0 %v214
    %v228 = vpop.f32.mrf.mxu0
    %v229 = vadd.f32 %v180, %v228
    %v230 = vpop.f32.mrf.mxu0
    %v231 = vadd.f32 %v182, %v230
    %232 = vmatmul.bf16.gmra.mxu0 %v217
    %v233 = vpop.f32.mrf.mxu0
    %v234 = vadd.f32 %v185, %v233
    %v235 = vpop.f32.mrf.mxu0
    %v236 = vadd.f32 %v187, %v235
    %237 = vdwg.mxu0
    %v238 = vld [vmem:[#allocation2 + $0x2] sm:$0xff]
    %v239 = vld [vmem:[#allocation2 + $0xa] sm:$0xff]
    %v240 = vld [vmem:[#allocation2 + $0x1a] sm:$0xff]
    %v241 = vld [vmem:[#allocation2 + $0x22] sm:$0xff]
    %v242 = vpack.c.bf16 %v239, %v238
    %v243 = vpack.c.bf16 %v241, %v240
    %s244 = scalar_lea.vmem [#allocation7], 64
    %v245 = vld [vmem:[%s244] sm:$0xf]
    %v246 = vld [vmem:[%s244 + $0x4] sm:$0xf]
    %v247 = vld [vmem:[%s244 + $0x8] sm:$0xf]
    %v248 = vld [vmem:[%s244 + $0xc] sm:$0xf]
    %v249 = vld [vmem:[%s244 + $0x10] sm:$0xf]
    %v250 = vld [vmem:[%s244 + $0x14] sm:$0xf]
    %v251 = vld [vmem:[%s244 + $0x18] sm:$0xf]
    %v252 = vld [vmem:[%s244 + $0x1c] sm:$0xf]
    %v261 = vunpack.c.l.b16 %v245
    %v262 = vunpack.c.l.b16 %v246
    %v263 = vunpack.c.l.b16 %v247
    %v264 = vunpack.c.l.b16 %v248
    %v265 = vunpack.c.l.b16 %v249
    %v266 = vunpack.c.l.b16 %v250
    %v267 = vunpack.c.l.b16 %v251
    %v268 = vunpack.c.l.b16 %v252
    %v269 = vpack.c.b16 %v262, %v261
    %v270 = vpack.c.b16 %v264, %v263
    %v271 = vpack.c.b16 %v266, %v265
    %v272 = vpack.c.b16 %v268, %v267
    %v278 = vsel %vm106, %v242, 0
    %v281 = vsel %vm106, %v243, 0
    %283 = vmatpush.bf16.msra.mxu0 0
    %284 = vmatpush.bf16.msra.mxu0 0
    %285 = vmatpush.bf16.msra.mxu0 0
    %286 = vmatpush.bf16.msra.mxu0 0
    %287 = vmatpush.bf16.msra.mxu0 %v272
    %288 = vmatpush.bf16.msra.mxu0 %v271
    %289 = vmatpush.bf16.msra.mxu0 %v270
    %290 = vmatpush.bf16.msra.mxu0 %v269
    %291 = vmatmul.bf16.gmra.mxu0 %v278
    %v292 = vpop.f32.mrf.mxu0
    %v293 = vadd.f32 0.0, %v292
    %v294 = vpop.f32.mrf.mxu0
    %v295 = vadd.f32 0.0, %v294
    %296 = vmatmul.bf16.gmra.mxu0 %v281
    %v297 = vpop.f32.mrf.mxu0
    %v298 = vadd.f32 0.0, %v297
    %v299 = vpop.f32.mrf.mxu0
    %v300 = vadd.f32 0.0, %v299
    %301 = vdwg.mxu0
    %v302 = vadd.f32 %v229, %v293
    %v303 = vadd.f32 %v231, %v295
    %v304 = vadd.f32 %v234, %v298
    %v305 = vadd.f32 %v236, %v300
    %v306 = vld [vmem:[%s2] sm:$0x1]
    %v307 = vld [vmem:[%s3] sm:$0x1]
    %v308 = vadd.f32 %v302, %v303
    %v309 = vadd.f32 %v308, %v304
    %v310 = vadd.f32 %v309, %v305
    %v311 = vrot.slane %v310, 4
    %v312 = vadd.f32 %v310, %v311
    %v313 = vrot.slane %v312, 2
    %v314 = vadd.f32 %v312, %v313
    %v315 = vrot.slane %v314, 1
    %v316 = vadd.f32 %v314, %v315
    %317 = vrot.lane.b32.xlu0 %v316, 8
    %v318 = vpop.permute.xlu0 %317
    %v319 = vadd.f32 %v316, %v318
    %320 = vrot.lane.b32.xlu0 %v319, 16
    %v321 = vpop.permute.xlu0 %320
    %v322 = vadd.f32 %v319, %v321
    %323 = vrot.lane.b32.xlu0 %v322, 32
    %v324 = vpop.permute.xlu0 %323
    %v325 = vadd.f32 %v322, %v324
    %326 = vrot.lane.b32.xlu0 %v325, 64
    %v327 = vpop.permute.xlu0 %326
    %v328 = vadd.f32 %v325, %v327
    %v329 = vmul.f32 %v328, 0.001953125
    %v330 = vperm.slane %v329, 0
    %v331 = vsub.f32 %v302, %v330
    %v332 = vsub.f32 %v303, %v330
    %v333 = vsub.f32 %v304, %v330
    %v334 = vsub.f32 %v305, %v330
    %v335 = vmul.f32 %v331, %v331
    %v336 = vmul.f32 %v332, %v332
    %v337 = vmul.f32 %v333, %v333
    %v338 = vmul.f32 %v334, %v334
    %v339 = vadd.f32 %v335, %v336
    %v340 = vadd.f32 %v339, %v337
    %v341 = vadd.f32 %v340, %v338
    %v342 = vrot.slane %v341, 4
    %v343 = vadd.f32 %v341, %v342
    %v344 = vrot.slane %v343, 2
    %v345 = vadd.f32 %v343, %v344
    %v346 = vrot.slane %v345, 1
    %v347 = vadd.f32 %v345, %v346
    %348 = vrot.lane.b32.xlu0 %v347, 8
    %v349 = vpop.permute.xlu0 %348
    %v350 = vadd.f32 %v347, %v349
    %351 = vrot.lane.b32.xlu0 %v350, 16
    %v352 = vpop.permute.xlu0 %351
    %v353 = vadd.f32 %v350, %v352
    %354 = vrot.lane.b32.xlu0 %v353, 32
    %v355 = vpop.permute.xlu0 %354
    %v356 = vadd.f32 %v353, %v355
    %357 = vrot.lane.b32.xlu0 %v356, 64
    %v358 = vpop.permute.xlu0 %357
    %v359 = vadd.f32 %v356, %v358
    %v360 = vmul.f32 %v359, 0.001953125
    %v361 = vadd.f32 %v360, 1e-05
    %v362 = vrsqrt.pop %v361
    %v363 = vmul.f32 %v362, %v361
    %v364 = vmul.f32 %v363, %v362
    %v365 = vmul.f32 0.5, %v364
    %v366 = vsub.f32 1.5, %v365
    %v367 = vmul.f32 %v362, %v366
    %vm368 = vweird.f32 %v361
    %vm369 = vweird.f32 %v362
    %vm370 = vmor %vm368, %vm369
    %v371 = vsel %vm370, %v362, %v367
    %v372 = vmul.f32 %v306, %v371
    %v373 = vmul.f32 %v329, %v372
    %v374 = vsub.f32 %v307, %v373
    %v376 = vperm.slane %v372, 0
    %v378 = vmul.f32 %v302, %v376
    %v379 = vmul.f32 %v303, %v376
    %v380 = vmul.f32 %v304, %v376
    %v381 = vmul.f32 %v305, %v376
    %v383 = vperm.slane %v374, 0
    %v385 = vadd.f32 %v378, %v383
    %v386 = vadd.f32 %v379, %v383
    %v387 = vadd.f32 %v380, %v383
    %v388 = vadd.f32 %v381, %v383
    %v389 = vmax.f32 %v385, 0.0
    %v390 = vmax.f32 %v386, 0.0
    %v391 = vmax.f32 %v387, 0.0
    %v392 = vmax.f32 %v388, 0.0
    %393 = vst [vmem:[#allocation3] sm:$0x1] 0.0
    %394 = vst [vmem:[#allocation3 + $0x18] sm:$0x1] 0.0
    %395 = vst [vmem:[#allocation3 + $0x11] sm:$0x1] 0.0
    %396 = vst [vmem:[#allocation3 + $0x29] sm:$0x1] 0.0
    %397 = vst [vmem:[#allocation3 + $0x1] sm:$0xff] %v389
    %398 = vst [vmem:[#allocation3 + $0x9] sm:$0xff] %v390
    %399 = vst [vmem:[#allocation3 + $0x19] sm:$0xff] %v391
    %400 = vst [vmem:[#allocation3 + $0x21] sm:$0xff] %v392
    %v401 = vld [vmem:[#allocation3] sm:$0xff]
    %v402 = vld [vmem:[#allocation3 + $0x8] sm:$0xff]
    %v403 = vld [vmem:[#allocation3 + $0x18] sm:$0xff]
    %v404 = vld [vmem:[#allocation3 + $0x20] sm:$0xff]
    %v405 = vpack.c.bf16 %v402, %v401
    %v406 = vpack.c.bf16 %v404, %v403
    %v407 = vld [vmem:[#allocation9] sm:$0xf]
    %v408 = vld [vmem:[#allocation9 + $0x4] sm:$0xf]
    %v409 = vld [vmem:[#allocation9 + $0x8] sm:$0xf]
    %v410 = vld [vmem:[#allocation9 + $0xc] sm:$0xf]
    %v411 = vld [vmem:[#allocation9 + $0x10] sm:$0xf]
    %v412 = vld [vmem:[#allocation9 + $0x14] sm:$0xf]
    %v413 = vld [vmem:[#allocation9 + $0x18] sm:$0xf]
    %v414 = vld [vmem:[#allocation9 + $0x1c] sm:$0xf]
    %v415 = vld [vmem:[#allocation9 + $0x20] sm:$0xf]
    %v416 = vld [vmem:[#allocation9 + $0x24] sm:$0xf]
    %v417 = vld [vmem:[#allocation9 + $0x28] sm:$0xf]
    %v418 = vld [vmem:[#allocation9 + $0x2c] sm:$0xf]
    %v419 = vld [vmem:[#allocation9 + $0x30] sm:$0xf]
    %v420 = vld [vmem:[#allocation9 + $0x34] sm:$0xf]
    %v421 = vld [vmem:[#allocation9 + $0x38] sm:$0xf]
    %v422 = vld [vmem:[#allocation9 + $0x3c] sm:$0xf]
    %v423 = vld [vmem:[#allocation3 + $0x1] sm:$0xff]
    %v424 = vld [vmem:[#allocation3 + $0x9] sm:$0xff]
    %v425 = vld [vmem:[#allocation3 + $0x19] sm:$0xff]
    %v426 = vld [vmem:[#allocation3 + $0x21] sm:$0xff]
    %v427 = vpack.c.bf16 %v424, %v423
    %v428 = vpack.c.bf16 %v426, %v425
    %s429 = scalar_lea.vmem [#allocation9], 64
    %v430 = vld [vmem:[%s429] sm:$0xf]
    %v431 = vld [vmem:[%s429 + $0x4] sm:$0xf]
    %v432 = vld [vmem:[%s429 + $0x8] sm:$0xf]
    %v433 = vld [vmem:[%s429 + $0xc] sm:$0xf]
    %v434 = vld [vmem:[%s429 + $0x10] sm:$0xf]
    %v435 = vld [vmem:[%s429 + $0x14] sm:$0xf]
    %v436 = vld [vmem:[%s429 + $0x18] sm:$0xf]
    %v437 = vld [vmem:[%s429 + $0x1c] sm:$0xf]
    %v438 = vld [vmem:[%s429 + $0x20] sm:$0xf]
    %v439 = vld [vmem:[%s429 + $0x24] sm:$0xf]
    %v440 = vld [vmem:[%s429 + $0x28] sm:$0xf]
    %v441 = vld [vmem:[%s429 + $0x2c] sm:$0xf]
    %v442 = vld [vmem:[%s429 + $0x30] sm:$0xf]
    %v443 = vld [vmem:[%s429 + $0x34] sm:$0xf]
    %v444 = vld [vmem:[%s429 + $0x38] sm:$0xf]
    %v445 = vld [vmem:[%s429 + $0x3c] sm:$0xf]
    %v462 = vunpack.c.l.b16 %v430
    %v463 = vunpack.c.l.b16 %v431
    %v464 = vunpack.c.l.b16 %v432
    %v465 = vunpack.c.l.b16 %v433
    %v466 = vunpack.c.l.b16 %v434
    %v467 = vunpack.c.l.b16 %v435
    %v468 = vunpack.c.l.b16 %v436
    %v469 = vunpack.c.l.b16 %v437
    %v470 = vunpack.c.l.b16 %v438
    %v471 = vunpack.c.l.b16 %v439
    %v472 = vunpack.c.l.b16 %v440
    %v473 = vunpack.c.l.b16 %v441
    %v474 = vunpack.c.l.b16 %v442
    %v475 = vunpack.c.l.b16 %v443
    %v476 = vunpack.c.l.b16 %v444
    %v477 = vunpack.c.l.b16 %v445
    %v478 = vpack.c.b16 %v463, %v462
    %v479 = vpack.c.b16 %v465, %v464
    %v480 = vpack.c.b16 %v467, %v466
    %v481 = vpack.c.b16 %v469, %v468
    %v482 = vpack.c.b16 %v471, %v470
    %v483 = vpack.c.b16 %v473, %v472
    %v484 = vpack.c.b16 %v475, %v474
    %v485 = vpack.c.b16 %v477, %v476
    %494 = vmatpush.bf16.msra.mxu0 %v485
    %495 = vmatpush.bf16.msra.mxu0 %v484
    %496 = vmatpush.bf16.msra.mxu0 %v483
    %497 = vmatpush.bf16.msra.mxu0 %v482
    %498 = vmatpush.bf16.msra.mxu0 %v481
    %499 = vmatpush.bf16.msra.mxu0 %v480
    %500 = vmatpush.bf16.msra.mxu0 %v479
    %501 = vmatpush.bf16.msra.mxu0 %v478
    %502 = vmatmul.bf16.gmra.mxu0 %v427
    %v503 = vpop.f32.mrf.mxu0
    %v504 = vadd.f32 0.0, %v503
    %v505 = vpop.f32.mrf.mxu0
    %v506 = vadd.f32 0.0, %v505
    %507 = vmatmul.bf16.gmra.mxu0 %v428
    %v508 = vpop.f32.mrf.mxu0
    %v509 = vadd.f32 0.0, %v508
    %v510 = vpop.f32.mrf.mxu0
    %v511 = vadd.f32 0.0, %v510
    %512 = vdwg.mxu0
    %v529 = vunpack.c.l.b16 %v407
    %v530 = vunpack.c.l.b16 %v408
    %v531 = vunpack.c.l.b16 %v409
    %v532 = vunpack.c.l.b16 %v410
    %v533 = vunpack.c.l.b16 %v411
    %v534 = vunpack.c.l.b16 %v412
    %v535 = vunpack.c.l.b16 %v413
    %v536 = vunpack.c.l.b16 %v414
    %v537 = vunpack.c.l.b16 %v415
    %v538 = vunpack.c.l.b16 %v416
    %v539 = vunpack.c.l.b16 %v417
    %v540 = vunpack.c.l.b16 %v418
    %v541 = vunpack.c.l.b16 %v419
    %v542 = vunpack.c.l.b16 %v420
    %v543 = vunpack.c.l.b16 %v421
    %v544 = vunpack.c.l.b16 %v422
    %v545 = vpack.c.b16 %v530, %v529
    %v546 = vpack.c.b16 %v532, %v531
    %v547 = vpack.c.b16 %v534, %v533
    %v548 = vpack.c.b16 %v536, %v535
    %v549 = vpack.c.b16 %v538, %v537
    %v550 = vpack.c.b16 %v540, %v539
    %v551 = vpack.c.b16 %v542, %v541
    %v552 = vpack.c.b16 %v544, %v543
    %561 = vmatpush.bf16.msra.mxu0 %v552
    %562 = vmatpush.bf16.msra.mxu0 %v551
    %563 = vmatpush.bf16.msra.mxu0 %v550
    %564 = vmatpush.bf16.msra.mxu0 %v549
    %565 = vmatpush.bf16.msra.mxu0 %v548
    %566 = vmatpush.bf16.msra.mxu0 %v547
    %567 = vmatpush.bf16.msra.mxu0 %v546
    %568 = vmatpush.bf16.msra.mxu0 %v545
    %569 = vmatmul.bf16.gmra.mxu0 %v405
    %v570 = vpop.f32.mrf.mxu0
    %v571 = vadd.f32 %v504, %v570
    %v572 = vpop.f32.mrf.mxu0
    %v573 = vadd.f32 %v506, %v572
    %574 = vmatmul.bf16.gmra.mxu0 %v406
    %v575 = vpop.f32.mrf.mxu0
    %v576 = vadd.f32 %v509, %v575
    %v577 = vpop.f32.mrf.mxu0
    %v578 = vadd.f32 %v511, %v577
    %579 = vdwg.mxu0
    %v580 = vld [vmem:[#allocation3 + $0x2] sm:$0xff]
    %v581 = vld [vmem:[#allocation3 + $0xa] sm:$0xff]
    %v582 = vld [vmem:[#allocation3 + $0x1a] sm:$0xff]
    %v583 = vld [vmem:[#allocation3 + $0x22] sm:$0xff]
    %v584 = vpack.c.bf16 %v581, %v580
    %v585 = vpack.c.bf16 %v583, %v582
    %s586 = scalar_lea.vmem [#allocation9], 128
    %v587 = vld [vmem:[%s586] sm:$0xf]
    %v588 = vld [vmem:[%s586 + $0x4] sm:$0xf]
    %v589 = vld [vmem:[%s586 + $0x8] sm:$0xf]
    %v590 = vld [vmem:[%s586 + $0xc] sm:$0xf]
    %v591 = vld [vmem:[%s586 + $0x10] sm:$0xf]
    %v592 = vld [vmem:[%s586 + $0x14] sm:$0xf]
    %v593 = vld [vmem:[%s586 + $0x18] sm:$0xf]
    %v594 = vld [vmem:[%s586 + $0x1c] sm:$0xf]
    %v595 = vld [vmem:[%s586 + $0x20] sm:$0xf]
    %v596 = vld [vmem:[%s586 + $0x24] sm:$0xf]
    %v597 = vld [vmem:[%s586 + $0x28] sm:$0xf]
    %v598 = vld [vmem:[%s586 + $0x2c] sm:$0xf]
    %v599 = vld [vmem:[%s586 + $0x30] sm:$0xf]
    %v600 = vld [vmem:[%s586 + $0x34] sm:$0xf]
    %v601 = vld [vmem:[%s586 + $0x38] sm:$0xf]
    %v602 = vld [vmem:[%s586 + $0x3c] sm:$0xf]
    %v619 = vunpack.c.l.b16 %v587
    %v620 = vunpack.c.l.b16 %v588
    %v621 = vunpack.c.l.b16 %v589
    %v622 = vunpack.c.l.b16 %v590
    %v623 = vunpack.c.l.b16 %v591
    %v624 = vunpack.c.l.b16 %v592
    %v625 = vunpack.c.l.b16 %v593
    %v626 = vunpack.c.l.b16 %v594
    %v627 = vunpack.c.l.b16 %v595
    %v628 = vunpack.c.l.b16 %v596
    %v629 = vunpack.c.l.b16 %v597
    %v630 = vunpack.c.l.b16 %v598
    %v631 = vunpack.c.l.b16 %v599
    %v632 = vunpack.c.l.b16 %v600
    %v633 = vunpack.c.l.b16 %v601
    %v634 = vunpack.c.l.b16 %v602
    %v635 = vpack.c.b16 %v620, %v619
    %v636 = vpack.c.b16 %v622, %v621
    %v637 = vpack.c.b16 %v624, %v623
    %v638 = vpack.c.b16 %v626, %v625
    %v639 = vpack.c.b16 %v628, %v627
    %v640 = vpack.c.b16 %v630, %v629
    %v641 = vpack.c.b16 %v632, %v631
    %v642 = vpack.c.b16 %v634, %v633
    %651 = vmatpush.bf16.msra.mxu0 %v642
    %652 = vmatpush.bf16.msra.mxu0 %v641
    %653 = vmatpush.bf16.msra.mxu0 %v640
    %654 = vmatpush.bf16.msra.mxu0 %v639
    %655 = vmatpush.bf16.msra.mxu0 %v638
    %656 = vmatpush.bf16.msra.mxu0 %v637
    %657 = vmatpush.bf16.msra.mxu0 %v636
    %658 = vmatpush.bf16.msra.mxu0 %v635
    %659 = vmatmul.bf16.gmra.mxu0 %v584
    %v660 = vpop.f32.mrf.mxu0
    %v661 = vadd.f32 0.0, %v660
    %v662 = vpop.f32.mrf.mxu0
    %v663 = vadd.f32 0.0, %v662
    %664 = vmatmul.bf16.gmra.mxu0 %v585
    %v665 = vpop.f32.mrf.mxu0
    %v666 = vadd.f32 0.0, %v665
    %v667 = vpop.f32.mrf.mxu0
    %v668 = vadd.f32 0.0, %v667
    %669 = vdwg.mxu0
    %v670 = vadd.f32 %v571, %v661
    %v671 = vadd.f32 %v573, %v663
    %v672 = vadd.f32 %v576, %v666
    %v673 = vadd.f32 %v578, %v668
    %v674 = vld [vmem:[%s5] sm:$0x1]
    %v675 = vld [vmem:[%s6] sm:$0x1]
    %v676 = vadd.f32 %v670, %v671
    %v677 = vadd.f32 %v676, %v672
    %v678 = vadd.f32 %v677, %v673
    %v679 = vrot.slane %v678, 4
    %v680 = vadd.f32 %v678, %v679
    %v681 = vrot.slane %v680, 2
    %v682 = vadd.f32 %v680, %v681
    %v683 = vrot.slane %v682, 1
    %v684 = vadd.f32 %v682, %v683
    %685 = vrot.lane.b32.xlu0 %v684, 8
    %v686 = vpop.permute.xlu0 %685
    %v687 = vadd.f32 %v684, %v686
    %688 = vrot.lane.b32.xlu0 %v687, 16
    %v689 = vpop.permute.xlu0 %688
    %v690 = vadd.f32 %v687, %v689
    %691 = vrot.lane.b32.xlu0 %v690, 32
    %v692 = vpop.permute.xlu0 %691
    %v693 = vadd.f32 %v690, %v692
    %694 = vrot.lane.b32.xlu0 %v693, 64
    %v695 = vpop.permute.xlu0 %694
    %v696 = vadd.f32 %v693, %v695
    %v697 = vmul.f32 %v696, 0.001953125
    %v698 = vperm.slane %v697, 0
    %v699 = vsub.f32 %v670, %v698
    %v700 = vsub.f32 %v671, %v698
    %v701 = vsub.f32 %v672, %v698
    %v702 = vsub.f32 %v673, %v698
    %v703 = vmul.f32 %v699, %v699
    %v704 = vmul.f32 %v700, %v700
    %v705 = vmul.f32 %v701, %v701
    %v706 = vmul.f32 %v702, %v702
    %v707 = vadd.f32 %v703, %v704
    %v708 = vadd.f32 %v707, %v705
    %v709 = vadd.f32 %v708, %v706
    %v710 = vrot.slane %v709, 4
    %v711 = vadd.f32 %v709, %v710
    %v712 = vrot.slane %v711, 2
    %v713 = vadd.f32 %v711, %v712
    %v714 = vrot.slane %v713, 1
    %v715 = vadd.f32 %v713, %v714
    %716 = vrot.lane.b32.xlu0 %v715, 8
    %v717 = vpop.permute.xlu0 %716
    %v718 = vadd.f32 %v715, %v717
    %719 = vrot.lane.b32.xlu0 %v718, 16
    %v720 = vpop.permute.xlu0 %719
    %v721 = vadd.f32 %v718, %v720
    %722 = vrot.lane.b32.xlu0 %v721, 32
    %v723 = vpop.permute.xlu0 %722
    %v724 = vadd.f32 %v721, %v723
    %725 = vrot.lane.b32.xlu0 %v724, 64
    %v726 = vpop.permute.xlu0 %725
    %v727 = vadd.f32 %v724, %v726
    %v728 = vmul.f32 %v727, 0.001953125
    %v729 = vadd.f32 %v728, 1e-05
    %v730 = vrsqrt.pop %v729
    %v731 = vmul.f32 %v730, %v729
    %v732 = vmul.f32 %v731, %v730
    %v733 = vmul.f32 0.5, %v732
    %v734 = vsub.f32 1.5, %v733
    %v735 = vmul.f32 %v730, %v734
    %vm736 = vweird.f32 %v729
    %vm737 = vweird.f32 %v730
    %vm738 = vmor %vm736, %vm737
    %v739 = vsel %vm738, %v730, %v735
    %v740 = vmul.f32 %v674, %v739
    %v741 = vmul.f32 %v697, %v740
    %v742 = vsub.f32 %v675, %v741
    %v743 = vld [vmem:[#allocation4] sm:$0xff]
    %v744 = vld [vmem:[#allocation4 + $0x8] sm:$0xff]
    %v745 = vld [vmem:[#allocation4 + $0x10] sm:$0xff]
    %v746 = vld [vmem:[#allocation4 + $0x18] sm:$0xff]
    %v747 = vpack.c.bf16 %v744, %v743
    %v748 = vpack.c.bf16 %v746, %v745
    %v749 = vld [vmem:[#allocation10] sm:$0xf]
    %v750 = vld [vmem:[#allocation10 + $0x4] sm:$0xf]
    %v751 = vld [vmem:[#allocation10 + $0x8] sm:$0xf]
    %v752 = vld [vmem:[#allocation10 + $0xc] sm:$0xf]
    %v753 = vld [vmem:[#allocation10 + $0x10] sm:$0xf]
    %v754 = vld [vmem:[#allocation10 + $0x14] sm:$0xf]
    %v755 = vld [vmem:[#allocation10 + $0x18] sm:$0xf]
    %v756 = vld [vmem:[#allocation10 + $0x1c] sm:$0xf]
    %v757 = vld [vmem:[%s8] sm:$0x1]
    %v759 = vperm.slane %v757, 0
    %v769 = vunpack.c.l.b16 %v749
    %v770 = vunpack.c.l.b16 %v750
    %v771 = vunpack.c.l.b16 %v751
    %v772 = vunpack.c.l.b16 %v752
    %v773 = vunpack.c.l.b16 %v753
    %v774 = vunpack.c.l.b16 %v754
    %v775 = vunpack.c.l.b16 %v755
    %v776 = vunpack.c.l.b16 %v756
    %v777 = vpack.c.b16 %v770, %v769
    %v778 = vpack.c.b16 %v772, %v771
    %v779 = vpack.c.b16 %v774, %v773
    %v780 = vpack.c.b16 %v776, %v775
    %v786 = vsel %vm106, %v747, 0
    %v789 = vsel %vm106, %v748, 0
    %791 = vmatpush.bf16.msra.mxu0 0
    %792 = vmatpush.bf16.msra.mxu0 0
    %793 = vmatpush.bf16.msra.mxu0 0
    %794 = vmatpush.bf16.msra.mxu0 0
    %795 = vmatpush.bf16.msra.mxu0 %v780
    %796 = vmatpush.bf16.msra.mxu0 %v779
    %797 = vmatpush.bf16.msra.mxu0 %v778
    %798 = vmatpush.bf16.msra.mxu0 %v777
    %799 = vmatmul.bf16.gmra.mxu0 %v786
    %v800 = vpop.f32.mrf.mxu0
    %v801 = vadd.f32 %v759, %v800
    %v802 = vpop.f32.mrf.mxu0
    %v803 = vadd.f32 %v759, %v802
    %804 = vmatmul.bf16.gmra.mxu0 %v789
    %v805 = vpop.f32.mrf.mxu0
    %v806 = vadd.f32 %v759, %v805
    %v807 = vpop.f32.mrf.mxu0
    %v808 = vadd.f32 %v759, %v807
    %809 = vdwg.mxu0
    %v811 = vperm.slane %v740, 0
    %v813 = vmul.f32 %v670, %v811
    %v814 = vmul.f32 %v671, %v811
    %v815 = vmul.f32 %v672, %v811
    %v816 = vmul.f32 %v673, %v811
    %v818 = vperm.slane %v742, 0
    %v820 = vadd.f32 %v813, %v818
    %v821 = vadd.f32 %v814, %v818
    %v822 = vadd.f32 %v815, %v818
    %v823 = vadd.f32 %v816, %v818
    %v824 = vadd.f32 %v820, %v801
    %v825 = vadd.f32 %v821, %v803
    %v826 = vadd.f32 %v822, %v806
    %v827 = vadd.f32 %v823, %v808
    %v828 = vmax.f32 %v824, 0.0
    %v829 = vmax.f32 %v825, 0.0
    %v830 = vmax.f32 %v826, 0.0
    %v831 = vmax.f32 %v827, 0.0
    %832 = vst [vmem:[#allocation12] sm:$0xff] %v828
    %833 = vst [vmem:[#allocation12 + $0x8] sm:$0xff] %v829
    %834 = vst [vmem:[#allocation12 + $0x10] sm:$0xff] %v830
    %835 = vst [vmem:[#allocation12 + $0x18] sm:$0xff] %v831
    // Predicated region
    $region54: #{tpu_custom_call.1} parent=1 // pred_check
      _
    $region55: #{tpu_custom_call.1} parent=1 // pred_check_branch
      %837 = sbr.rel (0) target = $region57
    $region56: #{tpu_custom_call.1} parent=1 // pred_region
      %839 = vsyncadd [#allocation6], 0
      %s840 = sshll.u32 [#allocation12], 4
      %s841 = int_to_ptr.vmem [resolvable:$true] %s840
      %s842 = sshll.u32 %s9, 4
      %s843 = int_to_ptr.hbm [resolvable:$true] %s842
      %848 = dma.vmem_to_hbm [thread:$0]  %s841, 512, %s843, [#allocation6], 128, 128, 8
    $region57: #{tpu_custom_call.1} parent=1 // pred_fallthru
      _
    // Predicated region
    $region58: #{tpu_custom_call.1} parent=1 // pred_check
      _
    $region59: #{tpu_custom_call.1} parent=1 // pred_check_branch
      %850 = sbr.rel (0) target = $region61
    $region60: #{tpu_custom_call.1} parent=1 // pred_region
      %852 = dma.done [#allocation6], 512
    $region61: #{tpu_custom_call.1} parent=1 // pred_fallthru
      _
    %853 = vsyncpa [#allocation5], 1
    %854 = vsyncpa [#allocation8], 1
    %855 = vsyncpa [#allocation11], 1
    %856 = vsyncpa [#allocation6], 1

</llo_original>
